<compile_context>
chip_gen: v5e
topology: v5e:2x2
jax: 0.10.0
libtpu: 0.0.40
codegen_flags: <defaults>
</compile_context>

<pallas_src>
import math
from copy import deepcopy

import numpy as np
import jax
import jax.numpy as jnp
from jax.experimental import pallas as pl
from jax.experimental.pallas import tpu as pltpu


# ----------------------------------------------------------------------------
# Color / index construction (pure Python/NumPy, same logic as the PyTorch code)
# ----------------------------------------------------------------------------
def create_colored_matrix(input_generators, output_generators):
    assert len(input_generators) == len(output_generators)
    assert len(input_generators) > 0
    p = len(input_generators)
    n = len(input_generators[0])
    m = len(output_generators[0])
    colors = {}
    for i in range(n):
        for j in range(m):
            colors[i, j] = i * m + j
    while True:
        old_colors = colors.copy()
        for k in range(p):
            input_gen = input_generators[k]
            output_gen = output_generators[k]
            for i in range(n):
                for j in range(m):
                    colors[i, j] = min(colors[i, j], colors[input_gen[i], output_gen[j]])
                    colors[input_gen[i], output_gen[j]] = colors[i, j]
        if colors == old_colors:
            break
    colors_list = sorted(list(set(colors.values())))
    num_colors = len(colors_list)
    color_to_idx = {colors_list[i]: i for i in range(num_colors)}
    for k, v in colors.items():
        colors[k] = color_to_idx[v]
    assert min(colors.values()) == 0
    assert max(colors.values()) == num_colors - 1
    return colors


def create_colored_vector(output_generators):
    assert len(output_generators) > 0
    p = len(output_generators)
    m = len(output_generators[0])
    colors = {i: i for i in range(m)}
    while True:
        old_colors = colors.copy()
        for k in range(p):
            output_gen = output_generators[k]
            for i in range(m):
                colors[i] = min(colors[i], colors[output_gen[i]])
                colors[output_gen[i]] = colors[i]
        if colors == old_colors:
            break
    colors_list = sorted(list(set(colors.values())))
    num_colors = len(colors_list)
    color_to_idx = {colors_list[i]: i for i in range(num_colors)}
    for k, v in colors.items():
        colors[k] = color_to_idx[v]
    assert min(colors.values()) == 0
    assert max(colors.values()) == num_colors - 1
    return colors


def dict_to_matrix(colored_matrix, transpose=False):
    indices = colored_matrix.keys()
    values = np.array(list(colored_matrix.values()))
    index_1, index_2 = zip(*indices)
    matrix = (np.zeros((max(index_1) + 1, max(index_2) + 1))
              if transpose else
              np.zeros((max(index_2) + 1, max(index_1) + 1)))
    matrix[np.array(index_1), np.array(index_2)] = values
    return matrix


def dict_to_vector(colored_vector):
    indices = np.array(list(colored_vector.keys()))
    values = np.array(list(colored_vector.values()))
    vector = np.zeros(max(indices) + 1)
    vector[indices] = values
    return vector


# ----------------------------------------------------------------------------
# Padding-aware VMEM model + block picking
# ----------------------------------------------------------------------------
def _vmem_capacity_bytes():
    """Per-core VMEM capacity; conservative fallback if the query is unavailable."""
    try:
        return int(pltpu.get_tpu_info().vmem_capacity_bytes)
    except Exception:
        return 64 * 1024 * 1024   # v7x per-TensorCore size: safe everywhere


def _padded_bytes(shape, dtype):
    """VMEM footprint of a block after (sublane, lane) tiling/padding."""
    dt = jnp.dtype(dtype)
    itemsize = dt.itemsize
    shape = tuple(int(s) for s in shape)
    if len(shape) == 0:
        shape = (1, 1)
    elif len(shape) == 1:
        shape = (1, shape[0])
    lead = int(np.prod(shape[:-2])) if len(shape) > 2 else 1
    s, l = shape[-2], shape[-1]
    sublane = 8 * max(1, 4 // itemsize)          # 8 for f32, 16 for bf16, 32 for int8
    s_pad = -(-s // sublane) * sublane
    l_pad = -(-l // 128) * 128
    return lead * s_pad * l_pad * itemsize


def _grid_step_vmem_bytes(tb, tc, O, I, dtype):
    """Double-buffered in/out blocks + the f32 broadcast-product intermediate."""
    blocks = (2 * _padded_bytes((O, I, tc), dtype)        # W block
              + 2 * _padded_bytes((tb, I, tc), dtype)     # x block
              + 2 * _padded_bytes((O, tc), dtype)         # bias block
              + 2 * _padded_bytes((tb, O, tc), dtype))    # out block
    intermediate = _padded_bytes((tb, O, I, tc), jnp.float32)   # always f32
    return blocks + intermediate


def _legal_channel_blocks(C):
    # Channel block is the LANE dim: must be a multiple of 128 or the full C.
    return sorted({d for d in range(1, C + 1) if C % d == 0 and (d == C or d % 128 == 0)})


def _pick_blocks(B, C, O, I, dtype, budget_bytes):
    tc_cands = _legal_channel_blocks(C)
    tb_cands = sorted({d for d in range(1, B + 1) if B % d == 0})
    best = None
    for tc in tc_cands:
        for tb in tb_cands:
            cost = _grid_step_vmem_bytes(tb, tc, O, I, dtype)
            if cost <= budget_bytes:
                key = (tb * tc, tc)         # biggest block, prefer wide channel blocks
                if best is None or key > best[0]:
                    best = (key, (tb, tc))
    if best is None:
        # Nothing fits the budget: degrade gracefully to the smallest legal block
        # (vmem_limit is raised to cover it below).
        return tb_cands[0], tc_cands[0]
    return best[1]


def _ensure_multi_step(tb, tc, B, C):
    """Keep >= 2 grid steps when possible so v7x's 2 TensorCores both get work."""
    if (B // tb) * (C // tc) >= 2:
        return tb, tc
    smaller_tb = [d for d in range(1, B + 1) if B % d == 0 and d < tb]
    if smaller_tb:
        return max(smaller_tb), tc
    smaller_tc = [d for d in _legal_channel_blocks(C) if d < tc]
    if smaller_tc:
        return tb, max(smaller_tc)
    return tb, tc


# ----------------------------------------------------------------------------
# Pallas kernel:  out[b, o, c] = sum_i x[b, i, c] * w[o, i, c] + bias[o, c]
# (channels-last blocks -- C dense in lanes, features in sublanes)
# ----------------------------------------------------------------------------
def _linear_equiv_kernel(w_ref, x_ref, b_ref, o_ref):
    # w_ref : (O, I, TC)    x_ref : (TB, I, TC)
    # b_ref : (O, TC)       o_ref : (TB, O, TC)
    x = x_ref[...]
    w = w_ref[...]
    b = b_ref[...]

    # Lane-dense VPU multiply, sublane (XLU) reduce over I, f32 accumulation.
    # Operands stay in their native dtype; only the accumulation is f32.
    prod = x[:, None, :, :] * w[None, :, :, :]             # (TB, O, I, TC)
    y = jnp.sum(prod, axis=2, dtype=jnp.float32)           # (TB, O, TC)
    y = y + b[None, :, :].astype(jnp.float32)
    o_ref[...] = y.astype(o_ref.dtype)
    # TODO(synk): for large O/I (>=128) switch this body to a batched
    # lax.dot_general on the MXU; the VPU path is the right unit here.


# ----------------------------------------------------------------------------
# Channels-last hot path (zero wrapper transposes)
# ----------------------------------------------------------------------------
def linear_equiv_depth_forward_cl(W_oic, x_bic, b_oc, *, batch_block=None,
                                  channel_block=None):
    """W_oic: (O, I, C), x_bic: (B, I, C), b_oc: (O, C) -> out: (B, O, C)."""
    O, I, C = W_oic.shape
    B = x_bic.shape[0]
    assert x_bic.shape == (B, I, C)
    assert b_oc.shape == (O, C)

    dtype = x_bic.dtype
    vmem_cap = _vmem_capacity_bytes()
    budget = (vmem_cap * 7) // 10            # ~45 MiB on v7x, ~90 MiB on v5e/v6e

    auto_tb, auto_tc = _pick_blocks(B, C, O, I, dtype, budget)
    tb = batch_block if batch_block is not None else auto_tb
    tc = channel_block if channel_block is not None else auto_tc

    # Legality checks (also for manually supplied blocks).
    assert B % tb == 0, "batch_block must divide B"
    assert C % tc == 0 and (tc == C or tc % 128 == 0), \
        "channel_block must divide C and be a multiple of 128 (or equal C)"

    if batch_block is None and channel_block is None:
        tb, tc = _ensure_multi_step(tb, tc, B, C)

    step_bytes = _grid_step_vmem_bytes(tb, tc, O, I, dtype)
    vmem_limit = int(min(int(vmem_cap * 0.9), max(2 * step_bytes, 16 * 1024 * 1024)))
    vmem_limit = max(vmem_limit, step_bytes + (4 << 20))   # never below the blocks
    vmem_limit = int(min(vmem_limit, int(vmem_cap * 0.95)))

    grid = (B // tb, C // tc)

    return pl.pallas_call(
        _linear_equiv_kernel,
        out_shape=jax.ShapeDtypeStruct((B, O, C), dtype),
        grid_spec=pltpu.PrefetchScalarGridSpec(
            num_scalar_prefetch=0,
            grid=grid,
            in_specs=[
                pl.BlockSpec((O, I, tc), lambda bi, ci: (0, 0, ci)),    # W   (O, I, C)
                pl.BlockSpec((tb, I, tc), lambda bi, ci: (bi, 0, ci)),  # x   (B, I, C)
                pl.BlockSpec((O, tc), lambda bi, ci: (0, ci)),          # b   (O, C)
            ],
            out_specs=pl.BlockSpec((tb, O, tc), lambda bi, ci: (bi, 0, ci)),  # (B, O, C)
        ),
        compiler_params=pltpu.CompilerParams(
            dimension_semantics=("parallel", "parallel"),
            vmem_limit_bytes=vmem_limit,
        ),
    )(W_oic, x_bic, b_oc)


# ----------------------------------------------------------------------------
# Module-layout wrapper: x (B, C, I) -> out (B, C, O), matching the PyTorch module
# ----------------------------------------------------------------------------
def linear_equiv_depth_forward(W_oic, x_bci, b_oc):
    """Matches LinearEquivDepth.forward: x (B, C, I) -> out (B, C, O).

    Pays one relayout in and one out; in a channels-last pipeline call
    linear_equiv_depth_forward_cl directly and pay neither.
    """
    x_cl = jnp.swapaxes(x_bci, 1, 2)                       # (B, I, C)
    out_cl = linear_equiv_depth_forward_cl(W_oic, x_cl, b_oc)   # (B, O, C)
    return jnp.swapaxes(out_cl, 1, 2)                      # (B, C, O)


# ----------------------------------------------------------------------------
# Parameter setup (deterministic, mirrors the module __init__ / reset_parameters).
# Params are materialized and stored channels-last ONCE here (outside hot path).
# ----------------------------------------------------------------------------
def make_params(in_generators, out_generators, channels, key, fan='default'):
    in_features = len(in_generators[0])
    out_features = len(out_generators[0])

    colors_W = create_colored_matrix(deepcopy(in_generators), deepcopy(out_generators))
    colors_b = create_colored_vector(deepcopy(out_generators))
    num_colors_W = len(set(colors_W.values()))
    num_colors_b = len(set(colors_b.values()))
    num_weights_W = num_colors_W * channels
    num_weights_b = num_colors_b * channels

    if fan == 'default':
        fan_in = in_features * channels
    elif fan == 'channels':
        fan_in = channels
    elif fan == 'features':
        fan_in = in_features
    else:
        raise ValueError("bad fan")

    # kaiming_uniform_ with a=sqrt(5), leaky_relu: gain = sqrt(2/(1+5)) = sqrt(1/3)
    gain = math.sqrt(2.0 / (1.0 + 5.0))
    std = gain / math.sqrt(fan_in)
    bound_w = math.sqrt(3.0) * std
    bound_b = 1.0 / math.sqrt(fan_in)

    kw, kb = jax.random.split(key)
    weight = jax.random.uniform(kw, (num_weights_W,), jnp.float32,
                                minval=-bound_w, maxval=bound_w)
    bias = jax.random.uniform(kb, (num_weights_b,), jnp.float32,
                              minval=-bound_b, maxval=bound_b)

    # idx_weight: (channels, out_features, in_features)
    channel_weights = dict_to_matrix(colors_W)
    base_channels = np.arange(channels) * num_colors_W
    idx_weight = (channel_weights[None, :, :] + base_channels[:, None, None]).astype(np.int32)

    # idx_bias: (channels, out_features)
    channel_bias = dict_to_vector(colors_b)
    base_channels = np.arange(channels) * num_colors_b
    idx_bias = (channel_bias[None, :] + base_channels[:, None]).astype(np.int32)

    # Gather (parameter materialization) + one-time transpose to channels-last.
    W_coi = weight[jnp.asarray(idx_weight)]                # (C, O, I)
    b_co = bias[jnp.asarray(idx_bias)]                     # (C, O)
    W_oic = jnp.transpose(W_coi, (1, 2, 0))                # (O, I, C)  channels-last
    b_oc = jnp.transpose(b_co)                             # (O, C)
    return W_oic, b_oc, in_features, out_features


if __name__ == "__main__":
    # Cyclic-group generators on 8 elements (in/out features = 8), 4 channels, batch 2.
    n = 8
    in_generators = [[(i + 1) % n for i in range(n)]]
    out_generators = [[(i + 1) % n for i in range(n)]]
    channels = 4
    batch = 2

    key = jax.random.PRNGKey(0)
    kparam, kx = jax.random.split(key)
    W_oic, b_oc, in_features, out_features = make_params(in_generators, out_generators,
                                                         channels, kparam)

    # Module-layout input, exactly like the PyTorch module: (B, C, I)
    x = jax.random.normal(kx, (batch, channels, in_features), jnp.float32)

    # 1) Module-layout entry point (relayout in/out around the channels-last kernel).
    out = linear_equiv_depth_forward(W_oic, x, b_oc)
    out = jax.block_until_ready(out)

    # 2) Channels-last hot path (what a channels-last pipeline would call directly).
    out_cl = linear_equiv_depth_forward_cl(W_oic, jnp.swapaxes(x, 1, 2), b_oc)
    out_cl = jax.block_until_ready(out_cl)

    # Reference: torch.einsum('ijk,bik->bij', W, x) + b  with W (C, O, I), b (C, O)
    W_coi = jnp.transpose(W_oic, (2, 0, 1))
    b_co = jnp.transpose(b_oc)
    ref = jnp.einsum('coi,bci->bco', W_coi, x) + b_co[None, :, :]

    assert out.shape == (batch, channels, out_features)
    np.testing.assert_allclose(np.asarray(out), np.asarray(ref), rtol=1e-5, atol=1e-5)
    np.testing.assert_allclose(np.asarray(jnp.swapaxes(out_cl, 1, 2)), np.asarray(ref),
                               rtol=1e-5, atol=1e-5)

    print("KERNEL_OK")
</pallas_src>

<mosaic_0001>
module attributes {stable_mosaic.version = 11 : i64} {
  func.func @_linear_equiv_kernel(%arg0: i32, %arg1: i32, %arg2: memref<8x8x4xf32, #tpu.memory_space<vmem>>, %arg3: memref<1x8x4xf32, #tpu.memory_space<vmem>>, %arg4: memref<8x4xf32, #tpu.memory_space<vmem>>, %arg5: memref<1x8x4xf32, #tpu.memory_space<vmem>>) attributes {dimension_semantics = [#tpu.dimension_semantics<parallel>, #tpu.dimension_semantics<parallel>], iteration_bounds = array<i64: 2, 1>, scalar_prefetch = 0 : i64, scratch_operands = 0 : i64, tpu.core_type = #tpu.core_type<tc>, window_params = [{transform_indices = @transform_0, window_bounds = array<i64: 8, 8, 4>}, {transform_indices = @transform_1, window_bounds = array<i64: 1, 8, 4>}, {transform_indices = @transform_2, window_bounds = array<i64: 8, 4>}, {transform_indices = @transform_3, window_bounds = array<i64: 1, 8, 4>}]} {
    %c0 = arith.constant 0 : index
    %c0_0 = arith.constant 0 : index
    %c0_1 = arith.constant 0 : index
    %0 = vector.load %arg3[%c0, %c0_0, %c0_1] : memref<1x8x4xf32, #tpu.memory_space<vmem>>, vector<1x8x4xf32>
    %c0_2 = arith.constant 0 : index
    %c0_3 = arith.constant 0 : index
    %c0_4 = arith.constant 0 : index
    %1 = vector.load %arg2[%c0_2, %c0_3, %c0_4] : memref<8x8x4xf32, #tpu.memory_space<vmem>>, vector<8x8x4xf32>
    %c0_5 = arith.constant 0 : index
    %c0_6 = arith.constant 0 : index
    %2 = vector.load %arg4[%c0_5, %c0_6] : memref<8x4xf32, #tpu.memory_space<vmem>>, vector<8x4xf32>
    %3 = vector.shape_cast %0 : vector<1x8x4xf32> to vector<1x1x8x4xf32>
    %4 = vector.shape_cast %1 : vector<8x8x4xf32> to vector<1x8x8x4xf32>
    %5 = vector.broadcast %3 : vector<1x1x8x4xf32> to vector<1x8x8x4xf32>
    %6 = arith.mulf %5, %4 : vector<1x8x8x4xf32>
    %cst = arith.constant dense<0.000000e+00> : vector<1x8x4xf32>
    %7 = vector.multi_reduction <add>, %6, %cst [2] : vector<1x8x8x4xf32> to vector<1x8x4xf32>
    %8 = vector.shape_cast %2 : vector<8x4xf32> to vector<1x8x4xf32>
    %9 = arith.addf %7, %8 : vector<1x8x4xf32>
    %c0_7 = arith.constant 0 : index
    %c0_8 = arith.constant 0 : index
    %c0_9 = arith.constant 0 : index
    %10 = vector.load %arg5[%c0_7, %c0_8, %c0_9] : memref<1x8x4xf32, #tpu.memory_space<vmem>>, vector<1x8x4xf32>
    tpu.vector_store %arg5[%c0_7, %c0_8, %c0_9], %9 {strides = array<i32>} : memref<1x8x4xf32, #tpu.memory_space<vmem>>, vector<1x8x4xf32>,
    return
  }
  func.func @transform_0(%arg0: i32, %arg1: i32) -> (i32, i32, i32) {
    %c0_i32 = arith.constant 0 : i32
    %c0_i32_0 = arith.constant 0 : i32
    %c0_i32_1 = arith.constant 0 : i32
    return %c0_i32, %c0_i32_0, %arg1 : i32, i32, i32
  }
  func.func @transform_1(%arg0: i32, %arg1: i32) -> (i32, i32, i32) {
    %c0_i32 = arith.constant 0 : i32
    %c0_i32_0 = arith.constant 0 : i32
    return %arg0, %c0_i32, %arg1 : i32, i32, i32
  }
  func.func @transform_2(%arg0: i32, %arg1: i32) -> (i32, i32) {
    %c0_i32 = arith.constant 0 : i32
    %c0_i32_0 = arith.constant 0 : i32
    return %c0_i32, %arg1 : i32, i32
  }
  func.func @transform_3(%arg0: i32, %arg1: i32) -> (i32, i32, i32) {
    %c0_i32 = arith.constant 0 : i32
    %c0_i32_0 = arith.constant 0 : i32
    return %arg0, %c0_i32, %arg1 : i32, i32, i32
  }
}

</mosaic_0001>

<llo_original>
// kernel: tpu_custom_call.1
$region0: #{tpu_custom_call.1}
  #allocation0 [shape = 'u32[]', space=smem, size = 0x4, offset = 0x4, fixed_abs, tag = 'smem constant byte address 0x4 - core index']
  #allocation1 [shape = 'u32[72,128]{1,0:T(1,128)}', space=vmem, size = 0x9000, scoped, tag = 'internal scratch']
  %s0 = inlined_call_operand.vmem [shape: f32[8,8,4], index: 0, kind: input, shape index: {}]
  %s1 = inlined_call_operand.vmem [shape: f32[2,8,4], index: 1, kind: input, shape index: {}]
  %s2 = inlined_call_operand.vmem [shape: f32[8,4], index: 2, kind: input, shape index: {}]
  %s3 = inlined_call_operand.vmem [shape: f32[2,8,4], index: 3, kind: output, shape index: {}]
  %s4 = sld [smem:[#allocation0]]
  $region45: #{tpu_custom_call.1} parent=0
    _
  %s6 = ssub.s32 1, %s4
  %s7 = scalar_select 0, %s6, %s4
  loop: start=0, step=1, limit=4
  $region2: #{tpu_custom_call.1} parent=0 // loop_pre_header
    _
  $region3: #{tpu_custom_call.1} parent=0 // loop_header
    %s9 = sphi 0, %s13
    %p10 = scmp.ge.s32.totalorder %s9, 4
    %s16 = sphi 0, %s28
    %s17 = sphi 0, %s24
    %s18 = sphi 0, %s16
    %s19 = sphi 0, %s17
    %s20 = sphi 0, %s18
    %s21 = sphi 0, %s19
    %s31 = sphi 0, %s33
    %s34 = sphi 0, %s31
    %s35 = sphi 0, %s34
    %s51 = sphi 0, %s35
    %s59 = sphi 0, %s61
    %s62 = sphi 0, %s59
    %s63 = sphi 0, %s62
    %s79 = sphi 0, %s63
    %s85 = sphi 0, %s87
    %s88 = sphi 0, %s85
    %s89 = sphi 0, %s88
    %s105 = sphi 0, %s89
    %s113 = sphi 0, %s115
    %s116 = sphi 0, %s113
    %s117 = sphi 0, %s116
    %s133 = sphi 0, %s117
  $region4: #{tpu_custom_call.1} parent=0 // loop_header_branch
    %12 = sbr.rel (%p10) target = $region8
  $region5: #{tpu_custom_call.1} parent=0 // loop_body
    %s14 = ssub.s32 %s9, 1
    %s15 = ssub.s32 %s9, 2
    %s22 = sadd.s32 1, %s17
    %p23 = scmp.ge.s32.totalorder %s22, 1
    %s24 = scalar_select %p23, 0, %s22
    %s25 = sadd.s32 1, %s16
    %s26 = scalar_select %p23, %s25, %s16
    %p27 = scmp.ge.s32.totalorder %s26, 2
    %s28 = scalar_select %p27, 0, %s26
    %s29 = ssub.s32 %s17, %s24
    %p30 = scmp.eq.s32.totalorder %s29, 0
    %s32 = sadd.s32 %s31, 1
    %s33 = scalar_select %p30, %s31, %s32
    %p36 = pneg %p30
    %p37 = scmp.eq.s32.totalorder %s9, 1
    %p38 = por %p36, %p37
    %p39 = scmp.ne.s32.totalorder %s31, %s34
    %p40 = scmp.eq.s32.totalorder %s9, 0
    %p41 = por %p39, %p40
    %p42 = scmp.ne.s32.totalorder %s31, %s34
    %p43 = scmp.eq.s32.totalorder %s14, 1
    %p44 = por %p42, %p43
    %p45 = scmp.ne.s32.totalorder %s34, %s35
    %p46 = scmp.eq.s32.totalorder %s14, 0
    %p47 = por %p45, %p46
    %p48 = scmp.ne.s32.totalorder %s34, %s35
    %p49 = scmp.eq.s32.totalorder %s15, 1
    %p50 = por %p48, %p49
    %p52 = scmp.ne.s32.totalorder %s35, %s51
    %p53 = scmp.eq.s32.totalorder %s15, 0
    %p54 = por %p52, %p53
    %s55 = ssub.s32 %s16, %s28
    %s56 = ssub.s32 %s17, %s24
    %s57 = sor.u32 %s55, %s56
    %p58 = scmp.eq.s32.totalorder %s57, 0
    %s60 = sadd.s32 %s59, 1
    %s61 = scalar_select %p58, %s59, %s60
    %p64 = pneg %p58
    %p65 = scmp.eq.s32.totalorder %s9, 1
    %p66 = por %p64, %p65
    %p67 = scmp.ne.s32.totalorder %s59, %s62
    %p68 = scmp.eq.s32.totalorder %s9, 0
    %p69 = por %p67, %p68
    %p70 = scmp.ne.s32.totalorder %s59, %s62
    %p71 = scmp.eq.s32.totalorder %s14, 1
    %p72 = por %p70, %p71
    %p73 = scmp.ne.s32.totalorder %s62, %s63
    %p74 = scmp.eq.s32.totalorder %s14, 0
    %p75 = por %p73, %p74
    %p76 = scmp.ne.s32.totalorder %s62, %s63
    %p77 = scmp.eq.s32.totalorder %s15, 1
    %p78 = por %p76, %p77
    %p80 = scmp.ne.s32.totalorder %s63, %s79
    %p81 = scmp.eq.s32.totalorder %s15, 0
    %p82 = por %p80, %p81
    %s83 = ssub.s32 %s17, %s24
    %p84 = scmp.eq.s32.totalorder %s83, 0
    %s86 = sadd.s32 %s85, 1
    %s87 = scalar_select %p84, %s85, %s86
    %p90 = pneg %p84
    %p91 = scmp.eq.s32.totalorder %s9, 1
    %p92 = por %p90, %p91
    %p93 = scmp.ne.s32.totalorder %s85, %s88
    %p94 = scmp.eq.s32.totalorder %s9, 0
    %p95 = por %p93, %p94
    %p96 = scmp.ne.s32.totalorder %s85, %s88
    %p97 = scmp.eq.s32.totalorder %s14, 1
    %p98 = por %p96, %p97
    %p99 = scmp.ne.s32.totalorder %s88, %s89
    %p100 = scmp.eq.s32.totalorder %s14, 0
    %p101 = por %p99, %p100
    %p102 = scmp.ne.s32.totalorder %s88, %s89
    %p103 = scmp.eq.s32.totalorder %s15, 1
    %p104 = por %p102, %p103
    %p106 = scmp.ne.s32.totalorder %s89, %s105
    %p107 = scmp.eq.s32.totalorder %s15, 0
    %p108 = por %p106, %p107
    %s109 = ssub.s32 %s16, %s28
    %s110 = ssub.s32 %s17, %s24
    %s111 = sor.u32 %s109, %s110
    %p112 = scmp.eq.s32.totalorder %s111, 0
    %s114 = sadd.s32 %s113, 1
    %s115 = scalar_select %p112, %s113, %s114
    %p118 = pneg %p112
    %p119 = scmp.eq.s32.totalorder %s9, 1
    %p120 = por %p118, %p119
    %p121 = scmp.ne.s32.totalorder %s113, %s116
    %p122 = scmp.eq.s32.totalorder %s9, 0
    %p123 = por %p121, %p122
    %p124 = scmp.ne.s32.totalorder %s113, %s116
    %p125 = scmp.eq.s32.totalorder %s14, 1
    %p126 = por %p124, %p125
    %p127 = scmp.ne.s32.totalorder %s116, %s117
    %p128 = scmp.eq.s32.totalorder %s14, 0
    %p129 = por %p127, %p128
    %p130 = scmp.ne.s32.totalorder %s116, %s117
    %p131 = scmp.eq.s32.totalorder %s15, 1
    %p132 = por %p130, %p131
    %p134 = scmp.ne.s32.totalorder %s117, %s133
    %p135 = scmp.eq.s32.totalorder %s15, 0
    %p136 = por %p134, %p135
    %p137 = scmp.le.s32.totalorder 1, %s9
    %p138 = scmp.lt.s32.totalorder %s9, 3
    %p139 = pnand %p137, %p138
    %p140 = pneg %p139
    // Predicated region
    $region9: #{tpu_custom_call.1} parent=5 // pred_check
      _
    $region10: #{tpu_custom_call.1} parent=5 // pred_check_branch
      %142 = sbr.rel (%p139) target = $region12
    $region11: #{tpu_custom_call.1} parent=5 // pred_region
      %s143 = ssub.s32 %s9, 1
      // Predicated region
      $region13: #{tpu_custom_call.1} parent=11 // pred_check
        %p144 = pneg %p47
      $region14: #{tpu_custom_call.1} parent=11 // pred_check_branch
        %146 = sbr.rel (%p144) target = $region16
      $region15: #{tpu_custom_call.1} parent=11 // pred_region
        %p147 = scmp.lt.s32.totalorder %s19, 0
        %s148 = scalar_select %p147, %s19, 0
        %s149 = smul.addr %s148, 8
        %s150 = scalar_lea.vmem %s0, %s149
      $region16: #{tpu_custom_call.1} parent=11 // pred_fallthru
        _
      // Predicated region
      $region17: #{tpu_custom_call.1} parent=11 // pred_check
        %p151 = pneg %p101
      $region18: #{tpu_custom_call.1} parent=11 // pred_check_branch
        %153 = sbr.rel (%p151) target = $region20
      $region19: #{tpu_custom_call.1} parent=11 // pred_region
        %p154 = scmp.lt.s32.totalorder %s19, 0
        %s155 = scalar_select %p154, %s19, 0
        %s156 = smul.addr %s155, 8
        %s157 = scalar_lea.vmem %s2, %s156
      $region20: #{tpu_custom_call.1} parent=11 // pred_fallthru
        _
    $region12: #{tpu_custom_call.1} parent=5 // pred_fallthru
      _
    %p158 = scmp.lt.s32.totalorder %s9, 2
    // Predicated region
    $region21: #{tpu_custom_call.1} parent=5 // pred_check
      %p159 = pneg %p158
    $region22: #{tpu_custom_call.1} parent=5 // pred_check_branch
      %161 = sbr.rel (%p159) target = $region24
    $region23: #{tpu_custom_call.1} parent=5 // pred_region
      // Predicated region
      $region25: #{tpu_custom_call.1} parent=23 // pred_check
        %p162 = pneg %p69
      $region26: #{tpu_custom_call.1} parent=23 // pred_check_branch
        %164 = sbr.rel (%p162) target = $region28
      $region27: #{tpu_custom_call.1} parent=23 // pred_region
        %p165 = scmp.lt.s32.totalorder %s16, 1
        %s166 = scalar_select %p165, %s16, 1
        %p167 = scmp.lt.s32.totalorder %s17, 0
        %s168 = scalar_select %p167, %s17, 0
        %s169 = sadd.s32 %s168, %s166
        %s170 = smul.addr %s169, 8
        %s171 = scalar_lea.vmem %s1, %s170
      $region28: #{tpu_custom_call.1} parent=23 // pred_fallthru
        _
    $region24: #{tpu_custom_call.1} parent=5 // pred_fallthru
      _
    %p172 = scmp.le.s32.totalorder 1, %s9
    %p173 = scmp.lt.s32.totalorder %s9, 3
    %p174 = pnand %p172, %p173
    %p175 = pneg %p174
    // Predicated region
    $region29: #{tpu_custom_call.1} parent=5 // pred_check
      _
    $region30: #{tpu_custom_call.1} parent=5 // pred_check_branch
      %177 = sbr.rel (%p174) target = $region32
    $region31: #{tpu_custom_call.1} parent=5 // pred_region
      %s178 = ssub.s32 %s9, 1
      %p179 = scmp.lt.s32.totalorder %s19, 0
      %s180 = scalar_select %p179, %s19, 0
      %s181 = smul.addr %s180, 8
      %s182 = scalar_lea.vmem %s0, %s181
      %p183 = pneg %p47
      %p184 = pneg %p44
      %p185 = scmp.lt.s32.totalorder %s18, 1
      %s186 = scalar_select %p185, %s18, 1
      %p187 = scmp.lt.s32.totalorder %s19, 0
      %s188 = scalar_select %p187, %s19, 0
      %s189 = sadd.s32 %s188, %s186
      %s190 = smul.addr %s189, 8
      %s191 = scalar_lea.vmem %s1, %s190
      %p192 = pneg %p75
      %p193 = pneg %p72
      %p194 = scmp.lt.s32.totalorder %s19, 0
      %s195 = scalar_select %p194, %s19, 0
      %s196 = smul.addr %s195, 8
      %s197 = scalar_lea.vmem %s2, %s196
      %p198 = pneg %p101
      %p199 = pneg %p98
      %p200 = pneg %p129
      %p201 = pneg %p126
      %p202 = scmp.lt.s32.totalorder %s18, 1
      %s203 = scalar_select %p202, %s18, 1
      %p204 = scmp.lt.s32.totalorder %s19, 0
      %s205 = scalar_select %p204, %s19, 0
      %s206 = sadd.s32 %s205, %s203
      %s207 = smul.addr %s206, 8
      %s208 = scalar_lea.vmem %s3, %s207
      %p209 = scmp.lt.s32.totalorder %s19, 0
      %s210 = scalar_select %p209, %s19, 0
      %s211 = smul.addr %s210, 8
      %s212 = scalar_lea.vmem %s0, %s211
      %p213 = scmp.lt.s32.totalorder %s18, 1
      %s214 = scalar_select %p213, %s18, 1
      %p215 = scmp.lt.s32.totalorder %s19, 0
      %s216 = scalar_select %p215, %s19, 0
      %s217 = sadd.s32 %s216, %s214
      %s218 = smul.addr %s217, 8
      %s219 = scalar_lea.vmem %s1, %s218
      %p220 = scmp.lt.s32.totalorder %s19, 0
      %s221 = scalar_select %p220, %s19, 0
      %s222 = smul.addr %s221, 8
      %s223 = scalar_lea.vmem %s2, %s222
      %p224 = scmp.lt.s32.totalorder %s18, 1
      %s225 = scalar_select %p224, %s18, 1
      %p226 = scmp.lt.s32.totalorder %s19, 0
      %s227 = scalar_select %p226, %s19, 0
      %s228 = sadd.s32 %s227, %s225
      %s229 = smul.addr %s228, 8
      %s230 = scalar_lea.vmem %s3, %s229
      %v231 = vld [vmem:[%s219] sm:$0xff]
      %v232 = vld [vmem:[%s212] sm:$0xff]
      %v233 = vld [vmem:[%s212 + $0x8] sm:$0xff]
      %v234 = vld [vmem:[%s212 + $0x10] sm:$0xff]
      %v235 = vld [vmem:[%s212 + $0x18] sm:$0xff]
      %v236 = vld [vmem:[%s212 + $0x20] sm:$0xff]
      %v237 = vld [vmem:[%s212 + $0x28] sm:$0xff]
      %v238 = vld [vmem:[%s212 + $0x30] sm:$0xff]
      %v239 = vld [vmem:[%s212 + $0x38] sm:$0xff]
      %v240 = vld [vmem:[%s223] sm:$0xff]
      %v241 = vmul.f32 %v231, %v232
      %v242 = vmul.f32 %v231, %v233
      %v243 = vmul.f32 %v231, %v234
      %v244 = vmul.f32 %v231, %v235
      %v245 = vmul.f32 %v231, %v236
      %v246 = vmul.f32 %v231, %v237
      %v247 = vmul.f32 %v231, %v238
      %v248 = vmul.f32 %v231, %v239
      %vm249 = vcmask 31744
      %v250 = vsel %vm249, %v241, 0.0
      %v251 = vrot.slane %v250, 4
      %v252 = vadd.f32 %v250, %v251
      %v253 = vrot.slane %v252, 2
      %v254 = vadd.f32 %v252, %v253
      %v255 = vrot.slane %v254, 1
      %v256 = vadd.f32 %v254, %v255
      %v257 = vsel %vm249, %v242, 0.0
      %v258 = vrot.slane %v257, 4
      %v259 = vadd.f32 %v257, %v258
      %v260 = vrot.slane %v259, 2
      %v261 = vadd.f32 %v259, %v260
      %v262 = vrot.slane %v261, 1
      %v263 = vadd.f32 %v261, %v262
      %v264 = vsel %vm249, %v243, 0.0
      %v265 = vrot.slane %v264, 4
      %v266 = vadd.f32 %v264, %v265
      %v267 = vrot.slane %v266, 2
      %v268 = vadd.f32 %v266, %v267
      %v269 = vrot.slane %v268, 1
      %v270 = vadd.f32 %v268, %v269
      %v271 = vsel %vm249, %v244, 0.0
      %v272 = vrot.slane %v271, 4
      %v273 = vadd.f32 %v271, %v272
      %v274 = vrot.slane %v273, 2
      %v275 = vadd.f32 %v273, %v274
      %v276 = vrot.slane %v275, 1
      %v277 = vadd.f32 %v275, %v276
      %v278 = vsel %vm249, %v245, 0.0
      %v279 = vrot.slane %v278, 4
      %v280 = vadd.f32 %v278, %v279
      %v281 = vrot.slane %v280, 2
      %v282 = vadd.f32 %v280, %v281
      %v283 = vrot.slane %v282, 1
      %v284 = vadd.f32 %v282, %v283
      %v285 = vsel %vm249, %v246, 0.0
      %v286 = vrot.slane %v285, 4
      %v287 = vadd.f32 %v285, %v286
      %v288 = vrot.slane %v287, 2
      %v289 = vadd.f32 %v287, %v288
      %v290 = vrot.slane %v289, 1
      %v291 = vadd.f32 %v289, %v290
      %v292 = vsel %vm249, %v247, 0.0
      %v293 = vrot.slane %v292, 4
      %v294 = vadd.f32 %v292, %v293
      %v295 = vrot.slane %v294, 2
      %v296 = vadd.f32 %v294, %v295
      %v297 = vrot.slane %v296, 1
      %v298 = vadd.f32 %v296, %v297
      %v299 = vsel %vm249, %v248, 0.0
      %v300 = vrot.slane %v299, 4
      %v301 = vadd.f32 %v299, %v300
      %v302 = vrot.slane %v301, 2
      %v303 = vadd.f32 %v301, %v302
      %v304 = vrot.slane %v303, 1
      %v305 = vadd.f32 %v303, %v304
      %v307 = vrot.slane %v240, 1
      %v308 = vrot.slane %v240, 2
      %v309 = vrot.slane %v240, 3
      %v310 = vrot.slane %v240, 4
      %v311 = vrot.slane %v240, 5
      %v312 = vrot.slane %v240, 6
      %v313 = vrot.slane %v240, 7
      %v322 = vadd.f32 %v256, %v240
      %v323 = vadd.f32 %v263, %v307
      %v324 = vadd.f32 %v270, %v308
      %v325 = vadd.f32 %v277, %v309
      %v326 = vadd.f32 %v284, %v310
      %v327 = vadd.f32 %v291, %v311
      %v328 = vadd.f32 %v298, %v312
      %v329 = vadd.f32 %v305, %v313
      %v338 = vrot.slane %v323, 7
      %vm339 = vcmask 1041409
      %v340 = vsel %vm339, %v338, %v322
      %v341 = vrot.slane %v324, 6
      %vm342 = vcmask 1042434
      %v343 = vsel %vm342, %v341, %v340
      %v344 = vrot.slane %v325, 5
      %vm345 = vcmask 1043459
      %v346 = vsel %vm345, %v344, %v343
      %v347 = vrot.slane %v326, 4
      %vm348 = vcmask 1044484
      %v349 = vsel %vm348, %v347, %v346
      %v350 = vrot.slane %v327, 3
      %vm351 = vcmask 1045509
      %v352 = vsel %vm351, %v350, %v349
      %v353 = vrot.slane %v328, 2
      %vm354 = vcmask 1046534
      %v355 = vsel %vm354, %v353, %v352
      %v356 = vrot.slane %v329, 1
      %vm357 = vcmask 1047559
      %v358 = vsel %vm357, %v356, %v355
      %360 = vst.msk [vmem:[%s230] sm:$0xff] %vm249, %v358
      %p361 = scmp.lt.s32.totalorder %s18, 1
      %s362 = scalar_select %p361, %s18, 1
      %p363 = scmp.lt.s32.totalorder %s19, 0
      %s364 = scalar_select %p363, %s19, 0
      %s365 = sadd.s32 %s364, %s362
      %s366 = smul.addr %s365, 8
      %s367 = scalar_lea.vmem %s3, %s366
      // Predicated region
      $region33: #{tpu_custom_call.1} parent=31 // pred_check
        %p368 = pneg %p126
      $region34: #{tpu_custom_call.1} parent=31 // pred_check_branch
        %370 = sbr.rel (%p368) target = $region36
      $region35: #{tpu_custom_call.1} parent=31 // pred_region
        _
      $region36: #{tpu_custom_call.1} parent=31 // pred_fallthru
        _
    $region32: #{tpu_custom_call.1} parent=5 // pred_fallthru
      _
    %p371 = scmp.le.s32.totalorder 2, %s9
    // Predicated region
    $region37: #{tpu_custom_call.1} parent=5 // pred_check
      %p372 = pneg %p371
    $region38: #{tpu_custom_call.1} parent=5 // pred_check_branch
      %374 = sbr.rel (%p372) target = $region40
    $region39: #{tpu_custom_call.1} parent=5 // pred_region
      %s375 = ssub.s32 %s9, 2
      // Predicated region
      $region41: #{tpu_custom_call.1} parent=39 // pred_check
        %p376 = pneg %p132
      $region42: #{tpu_custom_call.1} parent=39 // pred_check_branch
        %378 = sbr.rel (%p376) target = $region44
      $region43: #{tpu_custom_call.1} parent=39 // pred_region
        %p379 = scmp.lt.s32.totalorder %s20, 1
        %s380 = scalar_select %p379, %s20, 1
        %p381 = scmp.lt.s32.totalorder %s21, 0
        %s382 = scalar_select %p381, %s21, 0
        %s383 = sadd.s32 %s382, %s380
        %s384 = smul.addr %s383, 8
        %s385 = scalar_lea.vmem %s3, %s384
      $region44: #{tpu_custom_call.1} parent=39 // pred_fallthru
        _
    $region40: #{tpu_custom_call.1} parent=5 // pred_fallthru
      _
  $region6: #{tpu_custom_call.1} parent=0 // loop_footer
    %s13 = sadd.s32 1, %s9
  $region7: #{tpu_custom_call.1} parent=0 // loop_footer_branch
    %8 = sbr.rel target = $region3
  $region8: #{tpu_custom_call.1} parent=0 // loop_exit
    _

</llo_original>
